<compile_context>
chip_gen: v6e
topology: v6e:2x2x1
jax: 0.10.0
libtpu: 0.0.40
codegen_flags: <defaults>
</compile_context>

<pallas_src>
import jax
import jax.numpy as jnp
import numpy as np
from jax.experimental import pallas as pl
from jax.experimental.pallas import tpu as pltpu

LANES = 128
MAX_TB = 512  # batch tile: many grid steps for v7x megacore balance, well past HBM roofline knee


def _round_up(n, m):
    return ((n + m - 1) // m) * m


def _tabular_nn_kernel(x_ref, w1_ref, b1_ref, w2_ref, b2_ref, o_ref):
    # x block: [TB, D_in] f32 -> bf16 for the MXU; accumulate in f32.
    x = x_ref[...].astype(jnp.bfloat16)
    h = jnp.dot(x, w1_ref[...], preferred_element_type=jnp.float32) + b1_ref[...]
    h = jnp.maximum(h, 0.0)                                     # ReLU in f32 (VPU)
    # Second matmul goes straight to the real class width C (narrow N is fine on the MXU;
    # padded hidden rows of w2 are zero so they contribute nothing).
    logits = (jnp.dot(h.astype(jnp.bfloat16), w2_ref[...],
                      preferred_element_type=jnp.float32) + b2_ref[...])
    # Numerically stable log_softmax over the real class axis (per-row only, so the
    # ragged/garbage rows of the final grid block stay row-local and are masked on store).
    m = jnp.max(logits, axis=-1, keepdims=True)
    shifted = logits - m
    lse = jnp.log(jnp.sum(jnp.exp(shifted), axis=-1, keepdims=True))
    o_ref[...] = shifted - lse


def prepare_params(w1, b1, w2, b2):
    """One-time (init-time) padding + bf16 cast of the weights.
    w1: [D_in, H], b1: [H], w2: [H, C], b2: [C] -- stored as [in, out] so the kernel does
    x @ W + b, matching PyTorch nn.Linear semantics."""
    D_in, H = w1.shape
    C = w2.shape[1]
    H_pad = _round_up(H, LANES)
    # Zero padding of the hidden dim is exact: ReLU(x@0 + 0) = 0, and the matching rows of
    # w2 are zero, so padded hidden units contribute nothing to the logits.
    w1p = jnp.zeros((D_in, H_pad), jnp.bfloat16).at[:, :H].set(w1.astype(jnp.bfloat16))
    b1p = jnp.zeros((1, H_pad), jnp.float32).at[:, :H].set(b1.reshape(1, H).astype(jnp.float32))
    w2p = jnp.zeros((H_pad, C), jnp.bfloat16).at[:H, :].set(w2.astype(jnp.bfloat16))
    b2p = b2.reshape(1, C).astype(jnp.float32)
    return w1p, b1p, w2p, b2p


@jax.jit
def tabular_nn_apply(x, w1p, b1p, w2p, b2p):
    """x: [B, D_in] f32. Returns log_softmax(fc2(relu(fc1(x)))) as [B, C] f32."""
    B, D_in = x.shape
    H_pad = w1p.shape[1]
    C = w2p.shape[1]

    # Batch tile: multiple of 8 sublanes, capped at MAX_TB. Ragged final block is handled by
    # Pallas (masked OOB writes), so no batch padding copy is needed.
    tb = min(MAX_TB, _round_up(B, 8))
    nb = pl.cdiv(B, tb)

    return pl.pallas_call(
        _tabular_nn_kernel,
        out_shape=jax.ShapeDtypeStruct((B, C), jnp.float32),
        grid=(nb,),
        in_specs=[
            pl.BlockSpec((tb, D_in), lambda i: (i, 0)),      # batch-tiled activations
            pl.BlockSpec((D_in, H_pad), lambda i: (0, 0)),   # VMEM-resident weights/biases
            pl.BlockSpec((1, H_pad), lambda i: (0, 0)),
            pl.BlockSpec((H_pad, C), lambda i: (0, 0)),
            pl.BlockSpec((1, C), lambda i: (0, 0)),
        ],
        out_specs=pl.BlockSpec((tb, C), lambda i: (i, 0)),   # real class width: no padded writeback
        compiler_params=pltpu.CompilerParams(
            dimension_semantics=("parallel",),               # shard batch axis across TCs (v7x)
        ),
    )(x, w1p, b1p, w2p, b2p)


def tabular_nn_forward(x, w1, b1, w2, b2):
    """Convenience wrapper: pad/cast weights then run the fused kernel."""
    return tabular_nn_apply(x, *prepare_params(w1, b1, w2, b2))


def reference_forward_f32(x, w1, b1, w2, b2):
    h = jnp.maximum(x @ w1 + b1.reshape(1, -1), 0.0)
    logits = h @ w2 + b2.reshape(1, -1)
    return jax.nn.log_softmax(logits, axis=1)


def reference_forward_bf16(x, w1, b1, w2, b2):
    # Mirrors the kernel's bf16-matmul / f32-accumulate numerics for a tight comparison.
    h = jnp.dot(x.astype(jnp.bfloat16), w1.astype(jnp.bfloat16),
                preferred_element_type=jnp.float32) + b1.reshape(1, -1)
    h = jnp.maximum(h, 0.0)
    logits = jnp.dot(h.astype(jnp.bfloat16), w2.astype(jnp.bfloat16),
                     preferred_element_type=jnp.float32) + b2.reshape(1, -1)
    return jax.nn.log_softmax(logits, axis=1)


if __name__ == "__main__":
    # Small shapes consistent with the module: batch=8, input_dim=16, hidden=32, output=8
    B, D_in, H, C = 8, 16, 32, 8

    key = jax.random.PRNGKey(0)
    kx, k1, k2, k3, k4, kx2 = jax.random.split(key, 6)

    x = jax.random.normal(kx, (B, D_in), dtype=jnp.float32)

    # Deterministic PyTorch-Linear-style init: uniform(-1/sqrt(fan_in), 1/sqrt(fan_in))
    bound1 = 1.0 / float(np.sqrt(D_in))
    bound2 = 1.0 / float(np.sqrt(H))
    w1 = jax.random.uniform(k1, (D_in, H), minval=-bound1, maxval=bound1, dtype=jnp.float32)
    b1 = jax.random.uniform(k2, (H,), minval=-bound1, maxval=bound1, dtype=jnp.float32)
    w2 = jax.random.uniform(k3, (H, C), minval=-bound2, maxval=bound2, dtype=jnp.float32)
    b2 = jax.random.uniform(k4, (C,), minval=-bound2, maxval=bound2, dtype=jnp.float32)

    # Weights are padded/cast once (init-time); the hot path is one jitted pallas_call.
    params = prepare_params(w1, b1, w2, b2)

    # --- toy-batch case (single grid step) ---
    out = jax.block_until_ready(tabular_nn_apply(x, *params))
    ref_bf16 = reference_forward_bf16(x, w1, b1, w2, b2)
    ref_f32 = reference_forward_f32(x, w1, b1, w2, b2)
    assert out.shape == (B, C)
    assert jnp.allclose(out, ref_bf16, atol=2e-3, rtol=2e-3), "mismatch vs bf16-matched reference"
    assert jnp.allclose(out, ref_f32, atol=5e-2, rtol=5e-2), "mismatch vs f32 reference"

    # --- larger ragged batch to exercise the cdiv grid + masked final block (multi-step grid) ---
    B2 = 1100
    x2 = jax.random.normal(kx2, (B2, D_in), dtype=jnp.float32)
    out2 = jax.block_until_ready(tabular_nn_apply(x2, *params))
    ref2 = reference_forward_f32(x2, w1, b1, w2, b2)
    assert out2.shape == (B2, C)
    assert jnp.allclose(out2, ref2, atol=5e-2, rtol=5e-2), "mismatch vs f32 reference (tiled batch)"
    assert bool(jnp.all(jnp.isfinite(out2))), "non-finite values leaked from ragged block"

    print("KERNEL_OK")
</pallas_src>

<mosaic_0001>
module attributes {stable_mosaic.version = 11 : i64} {
  func.func @_tabular_nn_kernel(%arg0: i32, %arg1: memref<8x16xf32, #tpu.memory_space<vmem>>, %arg2: memref<16x128xbf16, #tpu.memory_space<vmem>>, %arg3: memref<1x128xf32, #tpu.memory_space<vmem>>, %arg4: memref<128x8xbf16, #tpu.memory_space<vmem>>, %arg5: memref<1x8xf32, #tpu.memory_space<vmem>>, %arg6: memref<8x8xf32, #tpu.memory_space<vmem>>) attributes {dimension_semantics = [#tpu.dimension_semantics<parallel>], iteration_bounds = array<i64: 1>, scalar_prefetch = 0 : i64, scratch_operands = 0 : i64, tpu.core_type = #tpu.core_type<tc>, window_params = [{transform_indices = @transform_0, window_bounds = array<i64: 8, 16>}, {pipeline_mode = #tpu.pipeline_mode<synchronous>, transform_indices = @transform_1, window_bounds = array<i64: 16, 128>}, {pipeline_mode = #tpu.pipeline_mode<synchronous>, transform_indices = @transform_2, window_bounds = array<i64: 1, 128>}, {pipeline_mode = #tpu.pipeline_mode<synchronous>, transform_indices = @transform_3, window_bounds = array<i64: 128, 8>}, {pipeline_mode = #tpu.pipeline_mode<synchronous>, transform_indices = @transform_4, window_bounds = array<i64: 1, 8>}, {transform_indices = @transform_5, window_bounds = array<i64: 8, 8>}]} {
    %c0 = arith.constant 0 : index
    %c0_0 = arith.constant 0 : index
    %0 = vector.load %arg1[%c0, %c0_0] : memref<8x16xf32, #tpu.memory_space<vmem>>, vector<8x16xf32>
    %1 = arith.truncf %0 : vector<8x16xf32> to vector<8x16xbf16>
    %c0_1 = arith.constant 0 : index
    %c0_2 = arith.constant 0 : index
    %2 = vector.load %arg2[%c0_1, %c0_2] : memref<16x128xbf16, #tpu.memory_space<vmem>>, vector<16x128xbf16>
    %cst = arith.constant dense<0.000000e+00> : vector<8x128xf32>
    %3 = tpu.matmul %1, %2, %cst {dimension_numbers = #tpu.dot_dimension_numbers<[1], [0], [0], [1], [0, 0, 1, 1], [], []>} : vector<8x16xbf16>, vector<16x128xbf16>, vector<8x128xf32> -> vector<8x128xf32>
    %c0_3 = arith.constant 0 : index
    %c0_4 = arith.constant 0 : index
    %4 = vector.load %arg3[%c0_3, %c0_4] : memref<1x128xf32, #tpu.memory_space<vmem>>, vector<1x128xf32>
    %5 = vector.broadcast %4 : vector<1x128xf32> to vector<8x128xf32>
    %6 = arith.addf %3, %5 : vector<8x128xf32>
    %cst_5 = arith.constant 0.000000e+00 : f32
    %7 = vector.broadcast %cst_5 : f32 to vector<8x128xf32>
    %8 = arith.maximumf %6, %7 : vector<8x128xf32>
    %9 = arith.truncf %8 : vector<8x128xf32> to vector<8x128xbf16>
    %c0_6 = arith.constant 0 : index
    %c0_7 = arith.constant 0 : index
    %10 = vector.load %arg4[%c0_6, %c0_7] : memref<128x8xbf16, #tpu.memory_space<vmem>>, vector<128x8xbf16>
    %cst_8 = arith.constant dense<0.000000e+00> : vector<8x8xf32>
    %11 = tpu.matmul %9, %10, %cst_8 {dimension_numbers = #tpu.dot_dimension_numbers<[1], [0], [0], [1], [0, 0, 1, 1], [], []>} : vector<8x128xbf16>, vector<128x8xbf16>, vector<8x8xf32> -> vector<8x8xf32>
    %c0_9 = arith.constant 0 : index
    %c0_10 = arith.constant 0 : index
    %12 = vector.load %arg5[%c0_9, %c0_10] : memref<1x8xf32, #tpu.memory_space<vmem>>, vector<1x8xf32>
    %13 = vector.broadcast %12 : vector<1x8xf32> to vector<8x8xf32>
    %14 = arith.addf %11, %13 : vector<8x8xf32>
    %cst_11 = arith.constant dense<0xFF800000> : vector<8xf32>
    %15 = vector.multi_reduction <maximumf>, %14, %cst_11 [1] : vector<8x8xf32> to vector<8xf32>
    %16 = vector.shape_cast %15 : vector<8xf32> to vector<8x1xf32>
    %17 = vector.broadcast %16 : vector<8x1xf32> to vector<8x8xf32>
    %18 = arith.subf %14, %17 : vector<8x8xf32>
    %19 = math.exp %18 : vector<8x8xf32>
    %cst_12 = arith.constant dense<0.000000e+00> : vector<8xf32>
    %20 = vector.multi_reduction <add>, %19, %cst_12 [1] : vector<8x8xf32> to vector<8xf32>
    %21 = vector.shape_cast %20 : vector<8xf32> to vector<8x1xf32>
    %22 = math.log %21 : vector<8x1xf32>
    %23 = vector.broadcast %22 : vector<8x1xf32> to vector<8x8xf32>
    %24 = arith.subf %18, %23 : vector<8x8xf32>
    %c0_13 = arith.constant 0 : index
    %c0_14 = arith.constant 0 : index
    %25 = vector.load %arg6[%c0_13, %c0_14] : memref<8x8xf32, #tpu.memory_space<vmem>>, vector<8x8xf32>
    tpu.vector_store %arg6[%c0_13, %c0_14], %24 {strides = array<i32>} : memref<8x8xf32, #tpu.memory_space<vmem>>, vector<8x8xf32>,
    return
  }
  func.func @transform_0(%arg0: i32) -> (i32, i32) {
    %c0_i32 = arith.constant 0 : i32
    %c0_i32_0 = arith.constant 0 : i32
    return %arg0, %c0_i32 : i32, i32
  }
  func.func @transform_1(%arg0: i32) -> (i32, i32) {
    %c0_i32 = arith.constant 0 : i32
    %c0_i32_0 = arith.constant 0 : i32
    %c0_i32_1 = arith.constant 0 : i32
    return %c0_i32, %c0_i32_0 : i32, i32
  }
  func.func @transform_2(%arg0: i32) -> (i32, i32) {
    %c0_i32 = arith.constant 0 : i32
    %c0_i32_0 = arith.constant 0 : i32
    %c0_i32_1 = arith.constant 0 : i32
    return %c0_i32, %c0_i32_0 : i32, i32
  }
  func.func @transform_3(%arg0: i32) -> (i32, i32) {
    %c0_i32 = arith.constant 0 : i32
    %c0_i32_0 = arith.constant 0 : i32
    %c0_i32_1 = arith.constant 0 : i32
    return %c0_i32, %c0_i32_0 : i32, i32
  }
  func.func @transform_4(%arg0: i32) -> (i32, i32) {
    %c0_i32 = arith.constant 0 : i32
    %c0_i32_0 = arith.constant 0 : i32
    %c0_i32_1 = arith.constant 0 : i32
    return %c0_i32, %c0_i32_0 : i32, i32
  }
  func.func @transform_5(%arg0: i32) -> (i32, i32) {
    %c0_i32 = arith.constant 0 : i32
    %c0_i32_0 = arith.constant 0 : i32
    return %arg0, %c0_i32 : i32, i32
  }
}

</mosaic_0001>

<llo_original>
// kernel: tabular_nn_apply.1
$region0: #{tabular_nn_apply.1}
  #allocation0 [shape = 'u32[]', space=smem, size = 0x4, offset = 0x4, fixed_abs, tag = 'smem constant byte address 0x4 - core index']
  #allocation1 [shape = 'u32[144,128]{1,0:T(1,128)}', space=vmem, size = 0x12000, scoped, tag = 'internal scratch']
  %s0 = inlined_call_operand.vmem [shape: f32[8,16], index: 0, kind: input, shape index: {}]
  %s1 = inlined_call_operand.vmem [shape: bf16[16,128], index: 1, kind: input, shape index: {}]
  %s2 = inlined_call_operand.vmem [shape: f32[1,128], index: 2, kind: input, shape index: {}]
  %s3 = inlined_call_operand.vmem [shape: bf16[128,8], index: 3, kind: input, shape index: {}]
  %s4 = inlined_call_operand.vmem [shape: f32[1,8], index: 4, kind: input, shape index: {}]
  %s5 = inlined_call_operand.hbm [shape: f32[8,8], index: 5, kind: output, shape index: {}]
  %s6 = sld [smem:[#allocation0]]
  $region30: #{tabular_nn_apply.1} parent=0
    _
  %s8 = ssub.s32 1, %s6
  %s9 = scalar_select 0, %s8, %s6
  $region1: #{tabular_nn_apply.1} parent=0
    #allocation2 [shape = 'u8[4096]{0}', space=vmem, size = 0x1000, scoped, tag = 'output window, operand 0, single buffered']
    #allocation3 [shape = 's32[1]{0}', space=sflag, size = 0x4, scoped, tag = 'scoped memory for tabular_nn_apply.1']
    %10 = vsyncpa [#allocation3], 0
    // Predicated region
    $region2: #{tabular_nn_apply.1} parent=1 // pred_check
      _
    $region3: #{tabular_nn_apply.1} parent=1 // pred_check_branch
      %12 = sbr.rel (0) target = $region5
    $region4: #{tabular_nn_apply.1} parent=1 // pred_region
      _
    $region5: #{tabular_nn_apply.1} parent=1 // pred_fallthru
      _
    // Predicated region
    $region6: #{tabular_nn_apply.1} parent=1 // pred_check
      _
    $region7: #{tabular_nn_apply.1} parent=1 // pred_check_branch
      %14 = sbr.rel (0) target = $region9
    $region8: #{tabular_nn_apply.1} parent=1 // pred_region
      _
    $region9: #{tabular_nn_apply.1} parent=1 // pred_fallthru
      _
    // Predicated region
    $region10: #{tabular_nn_apply.1} parent=1 // pred_check
      _
    $region11: #{tabular_nn_apply.1} parent=1 // pred_check_branch
      %16 = sbr.rel (0) target = $region13
    $region12: #{tabular_nn_apply.1} parent=1 // pred_region
      _
    $region13: #{tabular_nn_apply.1} parent=1 // pred_fallthru
      _
    // Predicated region
    $region14: #{tabular_nn_apply.1} parent=1 // pred_check
      _
    $region15: #{tabular_nn_apply.1} parent=1 // pred_check_branch
      %18 = sbr.rel (0) target = $region17
    $region16: #{tabular_nn_apply.1} parent=1 // pred_region
      _
    $region17: #{tabular_nn_apply.1} parent=1 // pred_fallthru
      _
    // Predicated region
    $region18: #{tabular_nn_apply.1} parent=1 // pred_check
      _
    $region19: #{tabular_nn_apply.1} parent=1 // pred_check_branch
      %20 = sbr.rel (0) target = $region21
    $region20: #{tabular_nn_apply.1} parent=1 // pred_region
      _
    $region21: #{tabular_nn_apply.1} parent=1 // pred_fallthru
      _
    %v22 = vld [vmem:[%s0] sm:$0xff]
    %v23 = vpack.c.bf16 %v22, %v22
    %v24 = vld [vmem:[%s1] sm:$0xf]
    %v25 = vld [vmem:[%s1 + $0x4] sm:$0xf]
    %v26 = vld [vmem:[%s2] sm:$0x1]
    %v28 = vlaneseq
    %v29 = vshrl.u32 %v28, 7
    %v30 = vsub.s32 0, %v29
    %v31 = vrot.slane %v26, %v30
    %v35 = vunpack.c.l.b16 %v24
    %v36 = vunpack.c.l.b16 %v25
    %v37 = vpack.c.b16 %v36, %v35
    %vm39 = vcmask 130048
    %v41 = vsel %vm39, %v23, 0
    %43 = vmatprep.subr.bf16.mxu0 0
    %44 = vmatpush1.bf16.msra.mxu0 0
    %45 = vmatprep.subr.bf16.mxu0 0
    %46 = vmatpush1.bf16.msra.mxu0 0
    %47 = vmatprep.subr.bf16.mxu0 0
    %48 = vmatpush1.bf16.msra.mxu0 0
    %49 = vmatprep.subr.bf16.mxu0 0
    %50 = vmatpush1.bf16.msra.mxu0 0
    %51 = vmatprep.subr.bf16.mxu0 0
    %52 = vmatpush1.bf16.msra.mxu0 0
    %53 = vmatprep.subr.bf16.mxu0 0
    %54 = vmatpush1.bf16.msra.mxu0 0
    %55 = vmatprep.subr.bf16.mxu0 0
    %56 = vmatpush1.bf16.msra.mxu0 0
    %57 = vmatprep.subr.bf16.mxu0 0
    %58 = vmatpush1.bf16.msra.mxu0 %v37
    %59 = vmatprep.subr.bf16.mxu0 0
    %60 = vmatpush2.bf16.msra.mxu0 0
    %61 = vmatprep.subr.bf16.mxu0 0
    %62 = vmatpush2.bf16.msra.mxu0 0
    %63 = vmatprep.subr.bf16.mxu0 0
    %64 = vmatpush2.bf16.msra.mxu0 0
    %65 = vmatprep.subr.bf16.mxu0 0
    %66 = vmatpush2.bf16.msra.mxu0 0
    %67 = vmatprep.subr.bf16.mxu0 0
    %68 = vmatpush2.bf16.msra.mxu0 0
    %69 = vmatprep.subr.bf16.mxu0 0
    %70 = vmatpush2.bf16.msra.mxu0 0
    %71 = vmatprep.subr.bf16.mxu0 0
    %72 = vmatpush2.bf16.msra.mxu0 0
    %73 = vmatprep.subr.bf16.mxu0 0
    %74 = vmatpush2.bf16.msra.mxu0 0
    %75 = vmatprep.mubr.bf16.mxu0 0
    %76 = vmatmul.mubr.bf16.gmra.mxu0 %v41
    %v77 = vpop.f32.mrf.mxu0
    %v78 = vadd.f32 %v31, %v77
    %v79 = vpop.f32.mrf.mxu0
    %v80 = vpop.f32.mrf.mxu0
    %v81 = vpop.f32.mrf.mxu0
    %82 = vdwg.mxu0
    %v83 = vmax.f32 %v78, 0.0
    %v84 = vpack.c.bf16 %v83, %v83
    %v85 = vld [vmem:[%s3] sm:$0xf]
    %v86 = vld [vmem:[%s3 + $0x4] sm:$0xf]
    %v87 = vld [vmem:[%s3 + $0x8] sm:$0xf]
    %v88 = vld [vmem:[%s3 + $0xc] sm:$0xf]
    %v89 = vld [vmem:[%s3 + $0x10] sm:$0xf]
    %v90 = vld [vmem:[%s3 + $0x14] sm:$0xf]
    %v91 = vld [vmem:[%s3 + $0x18] sm:$0xf]
    %v92 = vld [vmem:[%s3 + $0x1c] sm:$0xf]
    %v93 = vld [vmem:[%s3 + $0x20] sm:$0xf]
    %v94 = vld [vmem:[%s3 + $0x24] sm:$0xf]
    %v95 = vld [vmem:[%s3 + $0x28] sm:$0xf]
    %v96 = vld [vmem:[%s3 + $0x2c] sm:$0xf]
    %v97 = vld [vmem:[%s3 + $0x30] sm:$0xf]
    %v98 = vld [vmem:[%s3 + $0x34] sm:$0xf]
    %v99 = vld [vmem:[%s3 + $0x38] sm:$0xf]
    %v100 = vld [vmem:[%s3 + $0x3c] sm:$0xf]
    %v101 = vld [vmem:[%s4] sm:$0x1]
    %v103 = vlaneseq
    %v104 = vshrl.u32 %v103, 7
    %v105 = vsub.s32 0, %v104
    %v106 = vrot.slane %v101, %v105
    %v124 = vunpack.c.l.b16 %v85
    %v125 = vunpack.c.l.b16 %v86
    %v126 = vunpack.c.l.b16 %v87
    %v127 = vunpack.c.l.b16 %v88
    %v128 = vunpack.c.l.b16 %v89
    %v129 = vunpack.c.l.b16 %v90
    %v130 = vunpack.c.l.b16 %v91
    %v131 = vunpack.c.l.b16 %v92
    %v132 = vunpack.c.l.b16 %v93
    %v133 = vunpack.c.l.b16 %v94
    %v134 = vunpack.c.l.b16 %v95
    %v135 = vunpack.c.l.b16 %v96
    %v136 = vunpack.c.l.b16 %v97
    %v137 = vunpack.c.l.b16 %v98
    %v138 = vunpack.c.l.b16 %v99
    %v139 = vunpack.c.l.b16 %v100
    %v140 = vpack.c.b16 %v125, %v124
    %v141 = vpack.c.b16 %v127, %v126
    %v142 = vpack.c.b16 %v129, %v128
    %v143 = vpack.c.b16 %v131, %v130
    %v144 = vpack.c.b16 %v133, %v132
    %v145 = vpack.c.b16 %v135, %v134
    %v146 = vpack.c.b16 %v137, %v136
    %v147 = vpack.c.b16 %v139, %v138
    %156 = vmatprep.subr.bf16.mxu0 0
    %157 = vmatpush1.bf16.msra.mxu0 %v147
    %158 = vmatprep.subr.bf16.mxu0 0
    %159 = vmatpush1.bf16.msra.mxu0 %v146
    %160 = vmatprep.subr.bf16.mxu0 0
    %161 = vmatpush1.bf16.msra.mxu0 %v145
    %162 = vmatprep.subr.bf16.mxu0 0
    %163 = vmatpush1.bf16.msra.mxu0 %v144
    %164 = vmatprep.subr.bf16.mxu0 0
    %165 = vmatpush1.bf16.msra.mxu0 %v143
    %166 = vmatprep.subr.bf16.mxu0 0
    %167 = vmatpush1.bf16.msra.mxu0 %v142
    %168 = vmatprep.subr.bf16.mxu0 0
    %169 = vmatpush1.bf16.msra.mxu0 %v141
    %170 = vmatprep.subr.bf16.mxu0 0
    %171 = vmatpush1.bf16.msra.mxu0 %v140
    %172 = vmatprep.subr.bf16.mxu0 0
    %173 = vmatpush2.bf16.msra.mxu0 0
    %174 = vmatprep.subr.bf16.mxu0 0
    %175 = vmatpush2.bf16.msra.mxu0 0
    %176 = vmatprep.subr.bf16.mxu0 0
    %177 = vmatpush2.bf16.msra.mxu0 0
    %178 = vmatprep.subr.bf16.mxu0 0
    %179 = vmatpush2.bf16.msra.mxu0 0
    %180 = vmatprep.subr.bf16.mxu0 0
    %181 = vmatpush2.bf16.msra.mxu0 0
    %182 = vmatprep.subr.bf16.mxu0 0
    %183 = vmatpush2.bf16.msra.mxu0 0
    %184 = vmatprep.subr.bf16.mxu0 0
    %185 = vmatpush2.bf16.msra.mxu0 0
    %186 = vmatprep.subr.bf16.mxu0 0
    %187 = vmatpush2.bf16.msra.mxu0 0
    %188 = vmatprep.mubr.bf16.mxu0 0
    %189 = vmatmul.mubr.bf16.gmra.mxu0 %v84
    %v190 = vpop.f32.mrf.mxu0
    %v191 = vadd.f32 %v106, %v190
    %v192 = vpop.f32.mrf.mxu0
    %v193 = vpop.f32.mrf.mxu0
    %v194 = vpop.f32.mrf.mxu0
    %195 = vdwg.mxu0
    %vm196 = vcmask 64512
    %v197 = vsel %vm196, %v191, -inf
    %198 = vmax.xlane.f32.xlu0 %v197
    %v199 = vpop.xlane.xlu0 %198
    %v200 = vsub.f32 %v191, %v199
    %v201 = vmul.f32 %v200, 1.442695
    %v202 = vpow.pop %v201
    %v203 = vsel %vm196, %v202, 0.0
    %204 = vadd.xlane.f32.xlu0 %v203
    %v205 = vpop.xlane.xlu0 %204
    %v206 = vlog2.pop %v205
    %v207 = vmul.f32 %v206, 0.6931472
    %v208 = vsub.f32 %v200, %v207
    %209 = vst.msk [vmem:[#allocation2] sm:$0xff] %vm196, %v208
    // Predicated region
    $region22: #{tabular_nn_apply.1} parent=1 // pred_check
      _
    $region23: #{tabular_nn_apply.1} parent=1 // pred_check_branch
      %211 = sbr.rel (0) target = $region25
    $region24: #{tabular_nn_apply.1} parent=1 // pred_region
      %s213 = ssub.s32 128, 128
      %214 = vsyncadd [#allocation3], %s213
      %s216 = sshll.u32 [#allocation2], 4
      %s217 = int_to_ptr.vmem [resolvable:$true] %s216
      %219 = dma.vmem_to_hbm [thread:$0]  %s217, 128, %s5, [#allocation3]
    $region25: #{tabular_nn_apply.1} parent=1 // pred_fallthru
      _
    // Predicated region
    $region26: #{tabular_nn_apply.1} parent=1 // pred_check
      _
    $region27: #{tabular_nn_apply.1} parent=1 // pred_check_branch
      %221 = sbr.rel (0) target = $region29
    $region28: #{tabular_nn_apply.1} parent=1 // pred_region
      %222 = dma.done [#allocation3], 128
    $region29: #{tabular_nn_apply.1} parent=1 // pred_fallthru
      _
    %223 = vsyncpa [#allocation3], 1

</llo_original>
